<compile_context>
chip_gen: v7x
topology: tpu7x:2x2x1
jax: 0.10.0
libtpu: 0.0.40
codegen_flags: <defaults>
</compile_context>

<pallas_src>
import functools
import math

import numpy as np

import jax
import jax.numpy as jnp
from jax.experimental import pallas as pl
from jax.experimental.pallas import tpu as pltpu


LANES = 128  # lane width of every packed slab


# ------------------------------ slab layout ----------------------------------

def _align16(n):
    return ((n + 15) // 16) * 16


def _slab_rows(C, L, H, D):
    """bf16-sublane-aligned row offsets of each section in the weight slab."""
    LC, LH = L * C, L * H
    r_head = _align16(LC)
    r_fc = r_head + _align16(LH)
    r_dec = r_fc + _align16(D)
    rows = r_dec + _align16(LH)
    return r_head, r_fc, r_dec, rows


# ------------------------------ fused kernel ---------------------------------

def _vae_kernel(data_ref, w_ref, m_ref,
                loss_ref, md_ref, xr_ref,
                *, B, C, L, H, D, prec, r_head, r_fc, r_dec):
    LC = L * C
    LH = L * H
    two_pi = 2.0 * math.pi
    f32 = jnp.float32
    bf16 = jnp.bfloat16

    # -------- unpack per-call data slab (B, 128): [x_flat | offset | eps | 0]
    data = data_ref[...]                                   # (B, 128) f32
    x_flat = data[:, 0:LC]                                 # (B, LC)
    off = data[:, LC:LC + C]                               # (B, C)
    eps = data[:, LC + C:LC + C + D]                       # (B, D)

    # -------- unpack misc slab (biases + broadcast matrix), all f32
    m = m_ref[...]                                         # (16, 128)
    b_enc = m[0:1, 0:LH]                                   # conv bias tiled over L
    b_fc = m[1:2, 0:LH]
    b_head = m[2:3, :]                                     # lanes >= 2D are 0
    b_dec = m[3:4, :]                                      # lanes >= LC are 0
    t_bcast = m[8:8 + C, 0:LC]                             # (C, LC) 0/1 matrix

    # 1) translation noise: broadcast offset along L with one tiny matmul,
    #    xt = x + offset (no L-fold HBM buffer, no in-kernel reshape/tile)
    off_b = jnp.dot(off, t_bcast, preferred_element_type=f32)   # (B, LC)
    xt = x_flat + off_b

    # 2) encoder Conv1d(C->H,k=3,pad=1)+ReLU as ONE banded-dense bf16 matmul
    w_enc = w_ref[0:LC, 0:LH]                              # (LC, LH) bf16
    h = jnp.dot(xt.astype(bf16), w_enc, preferred_element_type=f32)
    h = jnp.maximum(h + b_enc, 0.0)                        # (B, LH) f32

    # 3) fused mu|d head: ONE (B,LH)@(LH,128) bf16 matmul (K = LH fills MXU)
    w_head = w_ref[r_head:r_head + LH, :]                  # (LH, 128), lanes>=2D zero
    md = jnp.dot(h.astype(bf16), w_head, preferred_element_type=f32) + b_head
    mu = md[:, 0:D]
    draw = md[:, D:2 * D]
    # numerically stable softplus + eps -> positive diagonal covariance
    d = jnp.maximum(draw, 0.0) + jnp.log(1.0 + jnp.exp(-jnp.abs(draw))) + 1e-4

    # 4) rsample of LowRankMultivariateNormal(mu, 0*cov_factor, d)
    z = mu + jnp.sqrt(d) * eps                             # (B, D) f32

    # 5) decoder Linear(D -> L*H)+ReLU as ONE (B,D)@(D,LH) bf16 matmul
    w_fc = w_ref[r_fc:r_fc + D, 0:LH]                      # (D, LH)
    g = jnp.dot(z.astype(bf16), w_fc, preferred_element_type=f32)
    g = jnp.maximum(g + b_fc, 0.0)                         # (B, LH) f32

    # 6) decoder Conv1d(H->C,k=3,pad=1) as ONE banded-dense bf16 matmul; the
    #    result is already a lane-dense (B,128) slab (lanes >= LC are zero)
    w_dec = w_ref[r_dec:r_dec + LH, :]                     # (LH, 128)
    xr = jnp.dot(g.astype(bf16), w_dec, preferred_element_type=f32) + b_dec

    # -------- outputs (lane-dense / fused)
    md_ref[:, 0:D] = mu
    md_ref[:, D:2 * D] = d
    xr_ref[...] = xr                                       # full-width store

    # 7) negative ELBO (constants follow the literal PyTorch forward())
    diff = xt - xr[:, 0:LC]
    l2 = jnp.sum(diff * diff)
    zsq = jnp.sum(z * z)
    logd = jnp.sum(jnp.log(d))
    pxz = -0.5 * C * math.log(two_pi / prec) - 0.5 * prec * l2
    elbo = -0.5 * (zsq + D * math.log(two_pi)) + pxz
    # sum over batch of entropy of N(mu, diag(d))
    elbo = elbo + B * (0.5 * D * (1.0 + math.log(two_pi))) + 0.5 * logd
    loss_ref[0] = -elbo


# ------------------------------ parameters -----------------------------------

def init_params(key, C, L, H, D):
    """Natural-shape parameters of the minimal encoder/decoder."""
    ks = jax.random.split(key, 4)
    p = {
        "enc_conv_w": 0.1 * jax.random.normal(ks[0], (3, C, H)),   # (K,Cin,Cout)
        "enc_conv_b": jnp.zeros((H,)),
        "enc_head_w": 0.1 * jax.random.normal(ks[1], (L, H, 2 * D)),
        "enc_head_b": jnp.zeros((2 * D,)),
        "dec_fc_w":   0.1 * jax.random.normal(ks[2], (D, L, H)),
        "dec_fc_b":   jnp.zeros((L * H,)),
        "dec_conv_w": 0.1 * jax.random.normal(ks[3], (3, H, C)),
        "dec_conv_b": jnp.zeros((C,)),
    }
    return jax.tree_util.tree_map(lambda a: a.astype(jnp.float32), p)


def pack_params(params, *, C, L, H, D):
    """Host-side packing into one bf16 weight slab + one f32 misc slab.

    NOTE: uses an l-major flatten of the (L,H) hidden; if trained PyTorch
    weights were ever loaded, enc_head_w / dec_fc_w would need a permutation
    to match torch's channel-major flatten.
    """
    LC, LH = L * C, L * H
    assert LH <= LANES and LC <= LANES and 2 * D <= LANES and C <= 8
    r_head, r_fc, r_dec, rows = _slab_rows(C, L, H, D)

    wce = np.asarray(params["enc_conv_w"], np.float32)     # (3, C, H)
    wcd = np.asarray(params["dec_conv_w"], np.float32)     # (3, H, C)

    # banded dense conv matrices (pad=1, k=3)
    w_enc = np.zeros((LC, LH), np.float32)
    w_dec = np.zeros((LH, LC), np.float32)
    for lo in range(L):
        for k in range(3):
            li = lo + k - 1
            if 0 <= li < L:
                w_enc[li * C:(li + 1) * C, lo * H:(lo + 1) * H] = wce[k]
                w_dec[li * H:(li + 1) * H, lo * C:(lo + 1) * C] = wcd[k]

    w_head = np.asarray(params["enc_head_w"], np.float32).reshape(LH, 2 * D)
    w_fc = np.asarray(params["dec_fc_w"], np.float32).reshape(D, LH)

    slab = np.zeros((rows, LANES), np.float32)
    slab[0:LC, 0:LH] = w_enc
    slab[r_head:r_head + LH, 0:2 * D] = w_head
    slab[r_fc:r_fc + D, 0:LH] = w_fc
    slab[r_dec:r_dec + LH, 0:LC] = w_dec

    misc = np.zeros((16, LANES), np.float32)
    misc[0, 0:LH] = np.tile(np.asarray(params["enc_conv_b"], np.float32), L)
    misc[1, 0:LH] = np.asarray(params["dec_fc_b"], np.float32)
    misc[2, 0:2 * D] = np.asarray(params["enc_head_b"], np.float32)
    misc[3, 0:LC] = np.tile(np.asarray(params["dec_conv_b"], np.float32), L)
    for c in range(C):                      # 0/1 matrix: (B,C) offset -> (B,LC)
        for l in range(L):
            misc[8 + c, l * C + c] = 1.0

    return {"w": jnp.asarray(slab, jnp.bfloat16),
            "misc": jnp.asarray(misc, jnp.float32)}


# ------------------------------ forward pass ----------------------------------

def vae_forward(packed, x, key, *, C, L, H, latent_dim=8, model_precision=1.0):
    B = x.shape[0]
    D = latent_dim
    LC = L * C
    assert LC + C + D <= LANES
    r_head, r_fc, r_dec, _ = _slab_rows(C, L, H, D)

    k_off, k_eps = jax.random.split(key)
    offset = 0.1 * jax.random.normal(k_off, (B, C), dtype=jnp.float32)
    eps = jax.random.normal(k_eps, (B, D), dtype=jnp.float32)

    # one layout change at the API boundary: NCW -> l-major NWC flatten,
    # then pack x / offset / eps into a single (B, 128) data slab (1 DMA).
    x_flat = jnp.transpose(x, (0, 2, 1)).reshape(B, LC)
    pad = jnp.zeros((B, LANES - LC - C - D), jnp.float32)
    data = jnp.concatenate([x_flat, offset, eps, pad], axis=1)

    kernel = functools.partial(_vae_kernel, B=B, C=C, L=L, H=H, D=D,
                               prec=model_precision,
                               r_head=r_head, r_fc=r_fc, r_dec=r_dec)
    loss, md, xr = pl.pallas_call(
        kernel,
        out_shape=(
            jax.ShapeDtypeStruct((1,), jnp.float32),          # neg ELBO
            jax.ShapeDtypeStruct((B, 2 * D), jnp.float32),    # fused mu|d
            jax.ShapeDtypeStruct((B, LANES), jnp.float32),    # x_rec (padded slab)
        ),
        out_specs=(
            pl.BlockSpec(memory_space=pltpu.MemorySpace.SMEM),
            pl.BlockSpec(memory_space=pltpu.MemorySpace.VMEM),
            pl.BlockSpec(memory_space=pltpu.MemorySpace.VMEM),
        ),
    )(data, packed["w"], packed["misc"])

    mu = md[:, :D]
    d = md[:, D:]
    x_rec = xr[:, :LC].reshape(B, L, C).transpose(0, 2, 1)    # (B, C, L)
    return loss[0], mu, d, x_rec


# ---------------------------------- main --------------------------------------

if __name__ == "__main__":
    B, C, L = 2, 4, 16      # batch, channels, sequence length
    H, D = 8, 8             # hidden channels, latent_dim

    root = jax.random.PRNGKey(0)
    k_param, k_x, k_noise = jax.random.split(root, 3)

    params = init_params(k_param, C, L, H, D)
    packed = pack_params(params, C=C, L=L, H=H, D=D)
    x = jax.random.normal(k_x, (B, C, L), dtype=jnp.float32)

    fwd = jax.jit(functools.partial(vae_forward, C=C, L=L, H=H,
                                    latent_dim=D, model_precision=1.0))
    neg_elbo, mu, d, x_rec = fwd(packed, x, k_noise)
    jax.block_until_ready((neg_elbo, mu, d, x_rec))

    assert mu.shape == (B, D) and d.shape == (B, D)
    assert x_rec.shape == (B, C, L)
    assert neg_elbo.shape == ()
    assert bool(jnp.isfinite(neg_elbo))
    assert bool(jnp.all(d > 0.0))
    print("KERNEL_OK")
</pallas_src>

<mosaic_0001>
module attributes {stable_mosaic.version = 11 : i64} {
  func.func @_vae_kernel(%arg0: memref<2x128xf32, #tpu.memory_space<vmem>>, %arg1: memref<336x128xbf16, #tpu.memory_space<vmem>>, %arg2: memref<16x128xf32, #tpu.memory_space<vmem>>, %arg3: memref<1xf32, #tpu.memory_space<smem>>, %arg4: memref<2x16xf32, #tpu.memory_space<vmem>>, %arg5: memref<2x128xf32, #tpu.memory_space<vmem>>) attributes {dimension_semantics = [], scalar_prefetch = 0 : i64, scratch_operands = 0 : i64, tpu.core_type = #tpu.core_type<tc>} {
    %c0 = arith.constant 0 : index
    %c0_0 = arith.constant 0 : index
    %0 = vector.load %arg0[%c0, %c0_0] : memref<2x128xf32, #tpu.memory_space<vmem>>, vector<2x128xf32>
    %1 = vector.extract_strided_slice %0 {offsets = [0, 0], sizes = [2, 64], strides = [1, 1]} : vector<2x128xf32> to vector<2x64xf32>
    %2 = vector.extract_strided_slice %0 {offsets = [0, 64], sizes = [2, 4], strides = [1, 1]} : vector<2x128xf32> to vector<2x4xf32>
    %3 = vector.extract_strided_slice %0 {offsets = [0, 68], sizes = [2, 8], strides = [1, 1]} : vector<2x128xf32> to vector<2x8xf32>
    %c0_1 = arith.constant 0 : index
    %c0_2 = arith.constant 0 : index
    %4 = vector.load %arg2[%c0_1, %c0_2] : memref<16x128xf32, #tpu.memory_space<vmem>>, vector<16x128xf32>
    %5 = vector.extract_strided_slice %4 {offsets = [0, 0], sizes = [1, 128], strides = [1, 1]} : vector<16x128xf32> to vector<1x128xf32>
    %6 = vector.extract_strided_slice %4 {offsets = [1, 0], sizes = [1, 128], strides = [1, 1]} : vector<16x128xf32> to vector<1x128xf32>
    %7 = vector.extract_strided_slice %4 {offsets = [2, 0], sizes = [1, 128], strides = [1, 1]} : vector<16x128xf32> to vector<1x128xf32>
    %8 = vector.extract_strided_slice %4 {offsets = [3, 0], sizes = [1, 128], strides = [1, 1]} : vector<16x128xf32> to vector<1x128xf32>
    %9 = vector.extract_strided_slice %4 {offsets = [8, 0], sizes = [4, 64], strides = [1, 1]} : vector<16x128xf32> to vector<4x64xf32>
    %cst = arith.constant dense<0.000000e+00> : vector<2x64xf32>
    %10 = tpu.matmul %2, %9, %cst {dimension_numbers = #tpu.dot_dimension_numbers<[1], [0], [0], [1], [0, 0, 1, 1], [], []>} : vector<2x4xf32>, vector<4x64xf32>, vector<2x64xf32> -> vector<2x64xf32>
    %11 = arith.addf %1, %10 : vector<2x64xf32>
    %c0_3 = arith.constant 0 : index
    %c0_4 = arith.constant 0 : index
    %12 = vector.load %arg1[%c0_3, %c0_4] : memref<336x128xbf16, #tpu.memory_space<vmem>>, vector<64x128xbf16>
    %13 = arith.truncf %11 : vector<2x64xf32> to vector<2x64xbf16>
    %cst_5 = arith.constant dense<0.000000e+00> : vector<2x128xf32>
    %14 = tpu.matmul %13, %12, %cst_5 {dimension_numbers = #tpu.dot_dimension_numbers<[1], [0], [0], [1], [0, 0, 1, 1], [], []>} : vector<2x64xbf16>, vector<64x128xbf16>, vector<2x128xf32> -> vector<2x128xf32>
    %15 = vector.broadcast %5 : vector<1x128xf32> to vector<2x128xf32>
    %16 = arith.addf %14, %15 : vector<2x128xf32>
    %cst_6 = arith.constant 0.000000e+00 : f32
    %17 = vector.broadcast %cst_6 : f32 to vector<2x128xf32>
    %18 = arith.maximumf %16, %17 : vector<2x128xf32>
    %c64 = arith.constant 64 : index
    %c0_7 = arith.constant 0 : index
    %19 = vector.load %arg1[%c64, %c0_7] : memref<336x128xbf16, #tpu.memory_space<vmem>>, vector<128x128xbf16>
    %20 = arith.truncf %18 : vector<2x128xf32> to vector<2x128xbf16>
    %cst_8 = arith.constant dense<0.000000e+00> : vector<2x128xf32>
    %21 = tpu.matmul %20, %19, %cst_8 {dimension_numbers = #tpu.dot_dimension_numbers<[1], [0], [0], [1], [0, 0, 1, 1], [], []>} : vector<2x128xbf16>, vector<128x128xbf16>, vector<2x128xf32> -> vector<2x128xf32>
    %22 = vector.broadcast %7 : vector<1x128xf32> to vector<2x128xf32>
    %23 = arith.addf %21, %22 : vector<2x128xf32>
    %24 = vector.extract_strided_slice %23 {offsets = [0, 0], sizes = [2, 8], strides = [1, 1]} : vector<2x128xf32> to vector<2x8xf32>
    %25 = vector.extract_strided_slice %23 {offsets = [0, 8], sizes = [2, 8], strides = [1, 1]} : vector<2x128xf32> to vector<2x8xf32>
    %cst_9 = arith.constant 0.000000e+00 : f32
    %26 = vector.broadcast %cst_9 : f32 to vector<2x8xf32>
    %27 = arith.maximumf %25, %26 : vector<2x8xf32>
    %28 = math.absf %25 : vector<2x8xf32>
    %cst_10 = arith.constant 0.000000e+00 : f32
    %29 = vector.broadcast %cst_10 : f32 to vector<2x8xf32>
    %30 = arith.subf %29, %28 : vector<2x8xf32>
    %31 = math.exp %30 : vector<2x8xf32>
    %cst_11 = arith.constant 1.000000e+00 : f32
    %32 = vector.broadcast %cst_11 : f32 to vector<2x8xf32>
    %33 = arith.addf %32, %31 : vector<2x8xf32>
    %34 = math.log %33 : vector<2x8xf32>
    %35 = arith.addf %27, %34 : vector<2x8xf32>
    %cst_12 = arith.constant 9.99999974E-5 : f32
    %36 = vector.broadcast %cst_12 : f32 to vector<2x8xf32>
    %37 = arith.addf %35, %36 : vector<2x8xf32>
    %38 = math.sqrt %37 : vector<2x8xf32>
    %39 = arith.mulf %38, %3 : vector<2x8xf32>
    %40 = arith.addf %24, %39 : vector<2x8xf32>
    %c192 = arith.constant 192 : index
    %c0_13 = arith.constant 0 : index
    %41 = vector.load %arg1[%c192, %c0_13] : memref<336x128xbf16, #tpu.memory_space<vmem>>, vector<8x128xbf16>
    %42 = arith.truncf %40 : vector<2x8xf32> to vector<2x8xbf16>
    %cst_14 = arith.constant dense<0.000000e+00> : vector<2x128xf32>
    %43 = tpu.matmul %42, %41, %cst_14 {dimension_numbers = #tpu.dot_dimension_numbers<[1], [0], [0], [1], [0, 0, 1, 1], [], []>} : vector<2x8xbf16>, vector<8x128xbf16>, vector<2x128xf32> -> vector<2x128xf32>
    %44 = vector.broadcast %6 : vector<1x128xf32> to vector<2x128xf32>
    %45 = arith.addf %43, %44 : vector<2x128xf32>
    %cst_15 = arith.constant 0.000000e+00 : f32
    %46 = vector.broadcast %cst_15 : f32 to vector<2x128xf32>
    %47 = arith.maximumf %45, %46 : vector<2x128xf32>
    %c208 = arith.constant 208 : index
    %c0_16 = arith.constant 0 : index
    %48 = vector.load %arg1[%c208, %c0_16] : memref<336x128xbf16, #tpu.memory_space<vmem>>, vector<128x128xbf16>
    %49 = arith.truncf %47 : vector<2x128xf32> to vector<2x128xbf16>
    %cst_17 = arith.constant dense<0.000000e+00> : vector<2x128xf32>
    %50 = tpu.matmul %49, %48, %cst_17 {dimension_numbers = #tpu.dot_dimension_numbers<[1], [0], [0], [1], [0, 0, 1, 1], [], []>} : vector<2x128xbf16>, vector<128x128xbf16>, vector<2x128xf32> -> vector<2x128xf32>
    %51 = vector.broadcast %8 : vector<1x128xf32> to vector<2x128xf32>
    %52 = arith.addf %50, %51 : vector<2x128xf32>
    %c0_18 = arith.constant 0 : index
    %c0_19 = arith.constant 0 : index
    %53 = vector.load %arg4[%c0_18, %c0_19] : memref<2x16xf32, #tpu.memory_space<vmem>>, vector<2x8xf32>
    tpu.vector_store %arg4[%c0_18, %c0_19], %24 {strides = array<i32>} : memref<2x16xf32, #tpu.memory_space<vmem>>, vector<2x8xf32>,
    %c0_20 = arith.constant 0 : index
    %c8 = arith.constant 8 : index
    %54 = vector.load %arg4[%c0_20, %c8] : memref<2x16xf32, #tpu.memory_space<vmem>>, vector<2x8xf32>
    tpu.vector_store %arg4[%c0_20, %c8], %37 {strides = array<i32>} : memref<2x16xf32, #tpu.memory_space<vmem>>, vector<2x8xf32>,
    %c0_21 = arith.constant 0 : index
    %c0_22 = arith.constant 0 : index
    %55 = vector.load %arg5[%c0_21, %c0_22] : memref<2x128xf32, #tpu.memory_space<vmem>>, vector<2x128xf32>
    tpu.vector_store %arg5[%c0_21, %c0_22], %52 {strides = array<i32>} : memref<2x128xf32, #tpu.memory_space<vmem>>, vector<2x128xf32>,
    %56 = vector.extract_strided_slice %52 {offsets = [0, 0], sizes = [2, 64], strides = [1, 1]} : vector<2x128xf32> to vector<2x64xf32>
    %57 = arith.subf %11, %56 : vector<2x64xf32>
    %58 = arith.mulf %57, %57 : vector<2x64xf32>
    %59 = vector.shape_cast %58 : vector<2x64xf32> to vector<1x2x64xf32>
    %cst_23 = arith.constant dense<0.000000e+00> : vector<1xf32>
    %60 = vector.multi_reduction <add>, %59, %cst_23 [1, 2] : vector<1x2x64xf32> to vector<1xf32>
    %61 = vector.shape_cast %60 : vector<1xf32> to vector<1x1x1xf32>
    %62 = vector.extract %61[0, 0, 0] : f32 from vector<1x1x1xf32>
    %63 = arith.mulf %40, %40 : vector<2x8xf32>
    %64 = vector.shape_cast %63 : vector<2x8xf32> to vector<1x2x8xf32>
    %cst_24 = arith.constant dense<0.000000e+00> : vector<1xf32>
    %65 = vector.multi_reduction <add>, %64, %cst_24 [1, 2] : vector<1x2x8xf32> to vector<1xf32>
    %66 = vector.shape_cast %65 : vector<1xf32> to vector<1x1x1xf32>
    %67 = vector.extract %66[0, 0, 0] : f32 from vector<1x1x1xf32>
    %68 = math.log %37 : vector<2x8xf32>
    %69 = vector.shape_cast %68 : vector<2x8xf32> to vector<1x2x8xf32>
    %cst_25 = arith.constant dense<0.000000e+00> : vector<1xf32>
    %70 = vector.multi_reduction <add>, %69, %cst_25 [1, 2] : vector<1x2x8xf32> to vector<1xf32>
    %71 = vector.shape_cast %70 : vector<1xf32> to vector<1x1x1xf32>
    %72 = vector.extract %71[0, 0, 0] : f32 from vector<1x1x1xf32>
    %cst_26 = arith.constant 5.000000e-01 : f32
    %73 = arith.mulf %cst_26, %62 : f32
    %cst_27 = arith.constant -3.67575407 : f32
    %74 = arith.subf %cst_27, %73 : f32
    %cst_28 = arith.constant 14.7030163 : f32
    %75 = arith.addf %67, %cst_28 : f32
    %cst_29 = arith.constant -5.000000e-01 : f32
    %76 = arith.mulf %cst_29, %75 : f32
    %77 = arith.addf %76, %74 : f32
    %cst_30 = arith.constant 22.7030163 : f32
    %78 = arith.addf %77, %cst_30 : f32
    %cst_31 = arith.constant 5.000000e-01 : f32
    %79 = arith.mulf %cst_31, %72 : f32
    %80 = arith.addf %78, %79 : f32
    %cst_32 = arith.constant 0.000000e+00 : f32
    %81 = arith.subf %cst_32, %80 : f32
    %c0_33 = arith.constant 0 : index
    %82 = memref.load %arg3[%c0_33] : memref<1xf32, #tpu.memory_space<smem>>
    memref.store %81, %arg3[%c0_33] : memref<1xf32, #tpu.memory_space<smem>>
    return
  }
}

</mosaic_0001>

<llo_original>
// kernel: vae_forward.3
$region0: #{vae_forward.3}
  #allocation0 [shape = 'u32[]', space=smem, size = 0x4, offset = 0x4, fixed_abs, tag = 'smem constant byte address 0x4 - core index']
  #allocation1 [shape = 'u32[144,128]{1,0:T(1,128)}', space=vmem, size = 0x12000, scoped, tag = 'internal scratch']
  %s0 = inlined_call_operand.vmem [shape: f32[2,128], index: 0, kind: input, shape index: {}]
  %s1 = inlined_call_operand.vmem [shape: bf16[336,128], index: 1, kind: input, shape index: {}]
  %s2 = inlined_call_operand.vmem [shape: f32[16,128], index: 2, kind: input, shape index: {}]
  %s3 = inlined_call_operand.hbm [shape: f32[1], index: 3, kind: output, shape index: {0}]
  %s4 = inlined_call_operand.vmem [shape: f32[2,16], index: 4, kind: output, shape index: {1}]
  %s5 = inlined_call_operand.vmem [shape: f32[2,128], index: 5, kind: output, shape index: {2}]
  %6 = xla_tuple %s3, %s4, %s5
  %s7 = sld [smem:[#allocation0]]
  $region38: #{vae_forward.3} parent=0
    _
  %s9 = ssub.s32 1, %s7
  %s10 = scalar_select 0, %s9, %s7
  $region1: #{vae_forward.3} parent=0
    #allocation2 [shape = 'u8[512]{0}', space=smem, size = 0x200, scoped, tag = 'output window, operand 0, single buffered']
    #allocation3 [shape = 's32[1]{0}', space=sflag, size = 0x4, scoped, tag = 'scoped memory for vae_forward.3']
    %11 = vsyncpa [#allocation3], 0
    // Predicated region
    $region2: #{vae_forward.3} parent=1 // pred_check
      _
    $region3: #{vae_forward.3} parent=1 // pred_check_branch
      %13 = sbr.rel (0) target = $region5
    $region4: #{vae_forward.3} parent=1 // pred_region
      _
    $region5: #{vae_forward.3} parent=1 // pred_fallthru
      _
    // Predicated region
    $region6: #{vae_forward.3} parent=1 // pred_check
      _
    $region7: #{vae_forward.3} parent=1 // pred_check_branch
      %15 = sbr.rel (0) target = $region9
    $region8: #{vae_forward.3} parent=1 // pred_region
      _
    $region9: #{vae_forward.3} parent=1 // pred_fallthru
      _
    // Predicated region
    $region10: #{vae_forward.3} parent=1 // pred_check
      _
    $region11: #{vae_forward.3} parent=1 // pred_check_branch
      %17 = sbr.rel (0) target = $region13
    $region12: #{vae_forward.3} parent=1 // pred_region
      _
    $region13: #{vae_forward.3} parent=1 // pred_fallthru
      _
    %v19 = vld [vmem:[%s0] sm:$0x3]
    %v20 = vld [vmem:[%s2] sm:$0xff]
    %v21 = vld [vmem:[%s2 + $0x8] sm:$0xff]
    %23 = vrot.lane.b32.xlu0 %v19, 64
    %v24 = vpop.permute.xlu0 %23
    %vm25 = vcmask 31744
    %v26 = vsel %vm25, %v24, 0
    %vm28 = vcmask 1043456
    %v30 = vsel %vm28, %v21, 0
    %32 = vmatprep.subr.mxu0 0.0
    %33 = vmatpush1.msra.mxu0 %v30
    %34 = vmatprep.subr.mxu0 0.0
    %35 = vmatpush1.msra.mxu0 0.0
    %36 = vmatprep.subr.mxu0 0.0
    %37 = vmatpush1.msra.mxu0 0.0
    %38 = vmatprep.subr.mxu0 0.0
    %39 = vmatpush1.msra.mxu0 0.0
    %40 = vmatprep.subr.mxu0 0.0
    %41 = vmatpush1.msra.mxu0 0.0
    %42 = vmatprep.subr.mxu0 0.0
    %43 = vmatpush1.msra.mxu0 0.0
    %44 = vmatprep.subr.mxu0 0.0
    %45 = vmatpush1.msra.mxu0 0.0
    %46 = vmatprep.subr.mxu0 0.0
    %47 = vmatpush1.msra.mxu0 0.0
    %48 = vmatprep.subr.mxu0 0.0
    %49 = vmatpush1.msra.mxu0 0.0
    %50 = vmatprep.subr.mxu0 0.0
    %51 = vmatpush1.msra.mxu0 0.0
    %52 = vmatprep.subr.mxu0 0.0
    %53 = vmatpush1.msra.mxu0 0.0
    %54 = vmatprep.subr.mxu0 0.0
    %55 = vmatpush1.msra.mxu0 0.0
    %56 = vmatprep.subr.mxu0 0.0
    %57 = vmatpush1.msra.mxu0 0.0
    %58 = vmatprep.subr.mxu0 0.0
    %59 = vmatpush1.msra.mxu0 0.0
    %60 = vmatprep.subr.mxu0 0.0
    %61 = vmatpush1.msra.mxu0 0.0
    %62 = vmatprep.subr.mxu0 0.0
    %63 = vmatpush1.msra.mxu0 0.0
    %64 = vmatprep.subr.mxu0 0.0
    %65 = vmatpush1.msra.mxu0 0.0
    %66 = vmatprep.subr.mxu0 0.0
    %67 = vmatpush1.msra.mxu0 0.0
    %68 = vmatprep.subr.mxu0 0.0
    %69 = vmatpush1.msra.mxu0 0.0
    %70 = vmatprep.subr.mxu0 0.0
    %71 = vmatpush1.msra.mxu0 0.0
    %72 = vmatprep.subr.mxu0 0.0
    %73 = vmatpush1.msra.mxu0 0.0
    %74 = vmatprep.subr.mxu0 0.0
    %75 = vmatpush1.msra.mxu0 0.0
    %76 = vmatprep.subr.mxu0 0.0
    %77 = vmatpush1.msra.mxu0 0.0
    %78 = vmatprep.subr.mxu0 0.0
    %79 = vmatpush1.msra.mxu0 0.0
    %80 = vmatprep.subr.mxu0 0.0
    %81 = vmatpush1.msra.mxu0 0.0
    %82 = vmatprep.subr.mxu0 0.0
    %83 = vmatpush1.msra.mxu0 0.0
    %84 = vmatprep.subr.mxu0 0.0
    %85 = vmatpush1.msra.mxu0 0.0
    %86 = vmatprep.subr.mxu0 0.0
    %87 = vmatpush1.msra.mxu0 0.0
    %88 = vmatprep.subr.mxu0 0.0
    %89 = vmatpush1.msra.mxu0 0.0
    %90 = vmatprep.subr.mxu0 0.0
    %91 = vmatpush1.msra.mxu0 0.0
    %92 = vmatprep.subr.mxu0 0.0
    %93 = vmatpush1.msra.mxu0 0.0
    %94 = vmatprep.subr.mxu0 0.0
    %95 = vmatpush1.msra.mxu0 0.0
    %96 = vmatprep.mubr.f32.mxu0 0.0
    %97 = vmatmul.mubr.f32.gmra.mrb[0].mxu0 %v26
    %v98 = vpop.f32.mrb[0].mxu0
    %v99 = vadd.f32 0.0, %v98
    %v100 = vpop.f32.mrb[0].mxu0
    %101 = vdwg.mxu0
    %v102 = vadd.f32 %v19, %v99
    %v103 = vld [vmem:[%s1] sm:$0xf]
    %v104 = vld [vmem:[%s1 + $0x4] sm:$0xf]
    %v105 = vld [vmem:[%s1 + $0x8] sm:$0xf]
    %v106 = vld [vmem:[%s1 + $0xc] sm:$0xf]
    %v107 = vld [vmem:[%s1 + $0x10] sm:$0xf]
    %v108 = vld [vmem:[%s1 + $0x14] sm:$0xf]
    %v109 = vld [vmem:[%s1 + $0x18] sm:$0xf]
    %v110 = vld [vmem:[%s1 + $0x1c] sm:$0xf]
    %v111 = vpack.c.bf16 %v102, %v102
    %v112 = vlaneseq
    %v113 = vshrl.u32 %v112, 7
    %v114 = vsub.s32 0, %v113
    %v115 = vrot.slane %v20, %v114
    %v124 = vunpack.c.l.b16 %v103
    %v125 = vunpack.c.l.b16 %v104
    %v126 = vunpack.c.l.b16 %v105
    %v127 = vunpack.c.l.b16 %v106
    %v128 = vunpack.c.l.b16 %v107
    %v129 = vunpack.c.l.b16 %v108
    %v130 = vunpack.c.l.b16 %v109
    %v131 = vunpack.c.l.b16 %v110
    %v132 = vpack.c.b16 %v125, %v124
    %v133 = vpack.c.b16 %v127, %v126
    %v134 = vpack.c.b16 %v129, %v128
    %v135 = vpack.c.b16 %v131, %v130
    %vm140 = vcmask 523264
    %v142 = vsel %vm140, %v111, 0
    %144 = vmatprep.subr.bf16.mxu0 0
    %145 = vmatpush1.bf16.msra.mxu0 %v132
    %146 = vmatprep.subr.bf16.mxu0 0
    %147 = vmatpush1.bf16.msra.mxu0 %v133
    %148 = vmatprep.subr.bf16.mxu0 0
    %149 = vmatpush1.bf16.msra.mxu0 %v134
    %150 = vmatprep.subr.bf16.mxu0 0
    %151 = vmatpush1.bf16.msra.mxu0 %v135
    %152 = vmatprep.subr.bf16.mxu0 0
    %153 = vmatpush1.bf16.msra.mxu0 0
    %154 = vmatprep.subr.bf16.mxu0 0
    %155 = vmatpush1.bf16.msra.mxu0 0
    %156 = vmatprep.subr.bf16.mxu0 0
    %157 = vmatpush1.bf16.msra.mxu0 0
    %158 = vmatprep.subr.bf16.mxu0 0
    %159 = vmatpush1.bf16.msra.mxu0 0
    %160 = vmatprep.subr.bf16.mxu0 0
    %161 = vmatpush1.bf16.msra.mxu0 0
    %162 = vmatprep.subr.bf16.mxu0 0
    %163 = vmatpush1.bf16.msra.mxu0 0
    %164 = vmatprep.subr.bf16.mxu0 0
    %165 = vmatpush1.bf16.msra.mxu0 0
    %166 = vmatprep.subr.bf16.mxu0 0
    %167 = vmatpush1.bf16.msra.mxu0 0
    %168 = vmatprep.subr.bf16.mxu0 0
    %169 = vmatpush1.bf16.msra.mxu0 0
    %170 = vmatprep.subr.bf16.mxu0 0
    %171 = vmatpush1.bf16.msra.mxu0 0
    %172 = vmatprep.subr.bf16.mxu0 0
    %173 = vmatpush1.bf16.msra.mxu0 0
    %174 = vmatprep.subr.bf16.mxu0 0
    %175 = vmatpush1.bf16.msra.mxu0 0
    %176 = vmatprep.mubr.bf16.mxu0 0
    %177 = vmatmul.mubr.bf16.gmra.mrb[0].mxu0 %v142
    %v178 = vpop.f32.mrb[0].mxu0
    %v179 = vadd.f32 %v115, %v178
    %v180 = vpop.f32.mrb[0].mxu0
    %v181 = vpop.f32.mrb[0].mxu0
    %v182 = vpop.f32.mrb[0].mxu0
    %183 = vdwg.mxu0
    %v184 = vmax.f32 %v179, 0.0
    %v185 = vld [vmem:[%s1 + $0x20] sm:$0xf]
    %v186 = vld [vmem:[%s1 + $0x24] sm:$0xf]
    %v187 = vld [vmem:[%s1 + $0x28] sm:$0xf]
    %v188 = vld [vmem:[%s1 + $0x2c] sm:$0xf]
    %v189 = vld [vmem:[%s1 + $0x30] sm:$0xf]
    %v190 = vld [vmem:[%s1 + $0x34] sm:$0xf]
    %v191 = vld [vmem:[%s1 + $0x38] sm:$0xf]
    %v192 = vld [vmem:[%s1 + $0x3c] sm:$0xf]
    %v193 = vld [vmem:[%s1 + $0x40] sm:$0xf]
    %v194 = vld [vmem:[%s1 + $0x44] sm:$0xf]
    %v195 = vld [vmem:[%s1 + $0x48] sm:$0xf]
    %v196 = vld [vmem:[%s1 + $0x4c] sm:$0xf]
    %v197 = vld [vmem:[%s1 + $0x50] sm:$0xf]
    %v198 = vld [vmem:[%s1 + $0x54] sm:$0xf]
    %v199 = vld [vmem:[%s1 + $0x58] sm:$0xf]
    %v200 = vld [vmem:[%s1 + $0x5c] sm:$0xf]
    %v201 = vpack.c.bf16 %v184, %v184
    %v202 = vlaneseq
    %v203 = vshrl.u32 %v202, 7
    %v204 = vsub.s32 2, %v203
    %v205 = vrot.slane %v20, %v204
    %v222 = vunpack.c.l.b16 %v185
    %v223 = vunpack.c.l.b16 %v186
    %v224 = vunpack.c.l.b16 %v187
    %v225 = vunpack.c.l.b16 %v188
    %v226 = vunpack.c.l.b16 %v189
    %v227 = vunpack.c.l.b16 %v190
    %v228 = vunpack.c.l.b16 %v191
    %v229 = vunpack.c.l.b16 %v192
    %v230 = vunpack.c.l.b16 %v193
    %v231 = vunpack.c.l.b16 %v194
    %v232 = vunpack.c.l.b16 %v195
    %v233 = vunpack.c.l.b16 %v196
    %v234 = vunpack.c.l.b16 %v197
    %v235 = vunpack.c.l.b16 %v198
    %v236 = vunpack.c.l.b16 %v199
    %v237 = vunpack.c.l.b16 %v200
    %v238 = vpack.c.b16 %v223, %v222
    %v239 = vpack.c.b16 %v225, %v224
    %v240 = vpack.c.b16 %v227, %v226
    %v241 = vpack.c.b16 %v229, %v228
    %v242 = vpack.c.b16 %v231, %v230
    %v243 = vpack.c.b16 %v233, %v232
    %v244 = vpack.c.b16 %v235, %v234
    %v245 = vpack.c.b16 %v237, %v236
    %254 = vmatprep.subr.bf16.mxu0 0
    %255 = vmatpush1.bf16.msra.mxu0 %v238
    %256 = vmatprep.subr.bf16.mxu0 0
    %257 = vmatpush1.bf16.msra.mxu0 %v239
    %258 = vmatprep.subr.bf16.mxu0 0
    %259 = vmatpush1.bf16.msra.mxu0 %v240
    %260 = vmatprep.subr.bf16.mxu0 0
    %261 = vmatpush1.bf16.msra.mxu0 %v241
    %262 = vmatprep.subr.bf16.mxu0 0
    %263 = vmatpush1.bf16.msra.mxu0 %v242
    %264 = vmatprep.subr.bf16.mxu0 0
    %265 = vmatpush1.bf16.msra.mxu0 %v243
    %266 = vmatprep.subr.bf16.mxu0 0
    %267 = vmatpush1.bf16.msra.mxu0 %v244
    %268 = vmatprep.subr.bf16.mxu0 0
    %269 = vmatpush1.bf16.msra.mxu0 %v245
    %270 = vmatprep.subr.bf16.mxu0 0
    %271 = vmatpush1.bf16.msra.mxu0 0
    %272 = vmatprep.subr.bf16.mxu0 0
    %273 = vmatpush1.bf16.msra.mxu0 0
    %274 = vmatprep.subr.bf16.mxu0 0
    %275 = vmatpush1.bf16.msra.mxu0 0
    %276 = vmatprep.subr.bf16.mxu0 0
    %277 = vmatpush1.bf16.msra.mxu0 0
    %278 = vmatprep.subr.bf16.mxu0 0
    %279 = vmatpush1.bf16.msra.mxu0 0
    %280 = vmatprep.subr.bf16.mxu0 0
    %281 = vmatpush1.bf16.msra.mxu0 0
    %282 = vmatprep.subr.bf16.mxu0 0
    %283 = vmatpush1.bf16.msra.mxu0 0
    %284 = vmatprep.subr.bf16.mxu0 0
    %285 = vmatpush1.bf16.msra.mxu0 0
    %286 = vmatprep.mubr.bf16.mxu0 0
    %287 = vmatmul.mubr.bf16.gmra.mrb[0].mxu0 %v201
    %v288 = vpop.f32.mrb[0].mxu0
    %v289 = vadd.f32 %v205, %v288
    %v290 = vpop.f32.mrb[0].mxu0
    %v291 = vpop.f32.mrb[0].mxu0
    %v292 = vpop.f32.mrb[0].mxu0
    %293 = vdwg.mxu0
    %v294 = vmax.f32 %v289, 0.0
    %v295 = vand.u32 2147483647, %v289
    %v296 = vsub.f32 0.0, %v295
    %v297 = vmul.f32 %v296, 1.442695
    %v298 = vpow.pop %v297
    %v299 = vadd.f32 %v298, 1.0
    %v300 = vlog2.pop %v299
    %v301 = vmul.f32 %v300, 0.6931472
    %v302 = vadd.f32 %v294, %v301
    %v303 = vadd.f32 %v302, 0.0001
    %v304 = vrsqrt.pop %v303
    %v305 = vmul.f32 %v303, %v304
    %vm306 = vcmp.eq.f32.partialorder %v303, inf
    %v307 = vsel %vm306, %v303, %v305
    %vm308 = vcmp.eq.f32.partialorder %v303, 0.0
    %v309 = vand.u32 %v303, 2147483648
    %v310 = vsel %vm308, %v309, %v307
    %311 = vrot.lane.b32.xlu0 %v19, 68
    %v312 = vpop.permute.xlu0 %311
    %v314 = vmul.f32 %v310, %v312
    %316 = vrot.lane.b32.xlu0 %v314, 120
    %v317 = vpop.permute.xlu0 %316
    %v319 = vadd.f32 %v289, %v317
    %v320 = vld [vmem:[%s1 + $0x60] sm:$0xf]
    %v321 = vpack.c.bf16 %v319, %v319
    %v322 = vlaneseq
    %v323 = vshrl.u32 %v322, 7
    %v324 = vsub.s32 1, %v323
    %v325 = vrot.slane %v20, %v324
    %vm326 = vcmask 64512
    %v328 = vsel %vm326, %v321, 0
    %v331 = vsel %vm28, %v320, 0
    %333 = vmatprep.subr.bf16.mxu0 0
    %334 = vmatpush1.bf16.msra.mxu0 %v331
    %335 = vmatprep.subr.bf16.mxu0 0
    %336 = vmatpush1.bf16.msra.mxu0 0
    %337 = vmatprep.subr.bf16.mxu0 0
    %338 = vmatpush1.bf16.msra.mxu0 0
    %339 = vmatprep.subr.bf16.mxu0 0
    %340 = vmatpush1.bf16.msra.mxu0 0
    %341 = vmatprep.subr.bf16.mxu0 0
    %342 = vmatpush1.bf16.msra.mxu0 0
    %343 = vmatprep.subr.bf16.mxu0 0
    %344 = vmatpush1.bf16.msra.mxu0 0
    %345 = vmatprep.subr.bf16.mxu0 0
    %346 = vmatpush1.bf16.msra.mxu0 0
    %347 = vmatprep.subr.bf16.mxu0 0
    %348 = vmatpush1.bf16.msra.mxu0 0
    %349 = vmatprep.subr.bf16.mxu0 0
    %350 = vmatpush1.bf16.msra.mxu0 0
    %351 = vmatprep.subr.bf16.mxu0 0
    %352 = vmatpush1.bf16.msra.mxu0 0
    %353 = vmatprep.subr.bf16.mxu0 0
    %354 = vmatpush1.bf16.msra.mxu0 0
    %355 = vmatprep.subr.bf16.mxu0 0
    %356 = vmatpush1.bf16.msra.mxu0 0
    %357 = vmatprep.subr.bf16.mxu0 0
    %358 = vmatpush1.bf16.msra.mxu0 0
    %359 = vmatprep.subr.bf16.mxu0 0
    %360 = vmatpush1.bf16.msra.mxu0 0
    %361 = vmatprep.subr.bf16.mxu0 0
    %362 = vmatpush1.bf16.msra.mxu0 0
    %363 = vmatprep.subr.bf16.mxu0 0
    %364 = vmatpush1.bf16.msra.mxu0 0
    %365 = vmatprep.mubr.bf16.mxu0 0
    %366 = vmatmul.mubr.bf16.gmra.mrb[0].mxu0 %v328
    %v367 = vpop.f32.mrb[0].mxu0
    %v368 = vadd.f32 %v325, %v367
    %v369 = vpop.f32.mrb[0].mxu0
    %v370 = vpop.f32.mrb[0].mxu0
    %v371 = vpop.f32.mrb[0].mxu0
    %372 = vdwg.mxu0
    %v373 = vmax.f32 %v368, 0.0
    %v374 = vld [vmem:[%s1 + $0x68] sm:$0xf]
    %v375 = vld [vmem:[%s1 + $0x6c] sm:$0xf]
    %v376 = vld [vmem:[%s1 + $0x70] sm:$0xf]
    %v377 = vld [vmem:[%s1 + $0x74] sm:$0xf]
    %v378 = vld [vmem:[%s1 + $0x78] sm:$0xf]
    %v379 = vld [vmem:[%s1 + $0x7c] sm:$0xf]
    %v380 = vld [vmem:[%s1 + $0x80] sm:$0xf]
    %v381 = vld [vmem:[%s1 + $0x84] sm:$0xf]
    %v382 = vld [vmem:[%s1 + $0x88] sm:$0xf]
    %v383 = vld [vmem:[%s1 + $0x8c] sm:$0xf]
    %v384 = vld [vmem:[%s1 + $0x90] sm:$0xf]
    %v385 = vld [vmem:[%s1 + $0x94] sm:$0xf]
    %v386 = vld [vmem:[%s1 + $0x98] sm:$0xf]
    %v387 = vld [vmem:[%s1 + $0x9c] sm:$0xf]
    %v388 = vld [vmem:[%s1 + $0xa0] sm:$0xf]
    %v389 = vld [vmem:[%s1 + $0xa4] sm:$0xf]
    %v390 = vpack.c.bf16 %v373, %v373
    %v391 = vlaneseq
    %v392 = vshrl.u32 %v391, 7
    %v393 = vsub.s32 3, %v392
    %v394 = vrot.slane %v20, %v393
    %v411 = vunpack.c.l.b16 %v374
    %v412 = vunpack.c.l.b16 %v375
    %v413 = vunpack.c.l.b16 %v376
    %v414 = vunpack.c.l.b16 %v377
    %v415 = vunpack.c.l.b16 %v378
    %v416 = vunpack.c.l.b16 %v379
    %v417 = vunpack.c.l.b16 %v380
    %v418 = vunpack.c.l.b16 %v381
    %v419 = vunpack.c.l.b16 %v382
    %v420 = vunpack.c.l.b16 %v383
    %v421 = vunpack.c.l.b16 %v384
    %v422 = vunpack.c.l.b16 %v385
    %v423 = vunpack.c.l.b16 %v386
    %v424 = vunpack.c.l.b16 %v387
    %v425 = vunpack.c.l.b16 %v388
    %v426 = vunpack.c.l.b16 %v389
    %v427 = vpack.c.b16 %v412, %v411
    %v428 = vpack.c.b16 %v414, %v413
    %v429 = vpack.c.b16 %v416, %v415
    %v430 = vpack.c.b16 %v418, %v417
    %v431 = vpack.c.b16 %v420, %v419
    %v432 = vpack.c.b16 %v422, %v421
    %v433 = vpack.c.b16 %v424, %v423
    %v434 = vpack.c.b16 %v426, %v425
    %443 = vmatprep.subr.bf16.mxu0 0
    %444 = vmatpush1.bf16.msra.mxu0 %v427
    %445 = vmatprep.subr.bf16.mxu0 0
    %446 = vmatpush1.bf16.msra.mxu0 %v428
    %447 = vmatprep.subr.bf16.mxu0 0
    %448 = vmatpush1.bf16.msra.mxu0 %v429
    %449 = vmatprep.subr.bf16.mxu0 0
    %450 = vmatpush1.bf16.msra.mxu0 %v430
    %451 = vmatprep.subr.bf16.mxu0 0
    %452 = vmatpush1.bf16.msra.mxu0 %v431
    %453 = vmatprep.subr.bf16.mxu0 0
    %454 = vmatpush1.bf16.msra.mxu0 %v432
    %455 = vmatprep.subr.bf16.mxu0 0
    %456 = vmatpush1.bf16.msra.mxu0 %v433
    %457 = vmatprep.subr.bf16.mxu0 0
    %458 = vmatpush1.bf16.msra.mxu0 %v434
    %459 = vmatprep.subr.bf16.mxu0 0
    %460 = vmatpush1.bf16.msra.mxu0 0
    %461 = vmatprep.subr.bf16.mxu0 0
    %462 = vmatpush1.bf16.msra.mxu0 0
    %463 = vmatprep.subr.bf16.mxu0 0
    %464 = vmatpush1.bf16.msra.mxu0 0
    %465 = vmatprep.subr.bf16.mxu0 0
    %466 = vmatpush1.bf16.msra.mxu0 0
    %467 = vmatprep.subr.bf16.mxu0 0
    %468 = vmatpush1.bf16.msra.mxu0 0
    %469 = vmatprep.subr.bf16.mxu0 0
    %470 = vmatpush1.bf16.msra.mxu0 0
    %471 = vmatprep.subr.bf16.mxu0 0
    %472 = vmatpush1.bf16.msra.mxu0 0
    %473 = vmatprep.subr.bf16.mxu0 0
    %474 = vmatpush1.bf16.msra.mxu0 0
    %475 = vmatprep.mubr.bf16.mxu0 0
    %476 = vmatmul.mubr.bf16.gmra.mrb[0].mxu0 %v390
    %v477 = vpop.f32.mrb[0].mxu0
    %v478 = vadd.f32 %v394, %v477
    %v479 = vpop.f32.mrb[0].mxu0
    %v480 = vpop.f32.mrb[0].mxu0
    %v481 = vpop.f32.mrb[0].mxu0
    %482 = vdwg.mxu0
    %vm483 = vcmask 58368
    %484 = vst.msk [vmem:[%s4] sm:$0x3] %vm483, %v289
    %vm485 = vcmask 123968
    %486 = vst.msk [vmem:[%s4] sm:$0x3] %vm485, %v303
    %487 = vst [vmem:[%s5] sm:$0x3] %v478
    %v488 = vsub.f32 %v102, %v478
    %v489 = vmul.f32 %v488, %v488
    %vm490 = vcmask 517120
    %v491 = vsel %vm490, %v489, 0.0
    %492 = vadd.xlane.f32.xlu0 %v491
    %v493 = vpop.xlane.xlu0 %492
    %v494 = vrot.slane %v493, 4
    %v495 = vadd.f32 %v493, %v494
    %v496 = vrot.slane %v495, 2
    %v497 = vadd.f32 %v495, %v496
    %v498 = vrot.slane %v497, 1
    %v499 = vadd.f32 %v497, %v498
    %s500 = vtos %v499
    %v501 = vmul.f32 %v319, %v319
    %v502 = vsel %vm483, %v501, 0.0
    %503 = vadd.xlane.f32.xlu0 %v502
    %v504 = vpop.xlane.xlu0 %503
    %v505 = vrot.slane %v504, 4
    %v506 = vadd.f32 %v504, %v505
    %v507 = vrot.slane %v506, 2
    %v508 = vadd.f32 %v506, %v507
    %v509 = vrot.slane %v508, 1
    %v510 = vadd.f32 %v508, %v509
    %s511 = vtos %v510
    %v512 = vlog2.pop %v303
    %v513 = vmul.f32 %v512, 0.6931472
    %515 = vrot.lane.b32.xlu0 %v513, 120
    %v516 = vpop.permute.xlu0 %515
    %v518 = vsel %vm483, %v516, 0.0
    %519 = vadd.xlane.f32.xlu0 %v518
    %v520 = vpop.xlane.xlu0 %519
    %v521 = vrot.slane %v520, 4
    %v522 = vadd.f32 %v520, %v521
    %v523 = vrot.slane %v522, 2
    %v524 = vadd.f32 %v522, %v523
    %v525 = vrot.slane %v524, 1
    %v526 = vadd.f32 %v524, %v525
    %s527 = vtos %v526
    %s528 = smul.f32 %s500, 0.5
    %s529 = ssub.f32 -3.675754, %s528
    %s530 = sadd.f32 %s511, 14.703016
    %s531 = smul.f32 %s530, -0.5
    %s532 = sadd.f32 %s531, %s529
    %s533 = sadd.f32 %s532, 22.703016
    %s534 = smul.f32 %s527, 0.5
    %s535 = sadd.f32 %s533, %s534
    %s536 = ssub.f32 0.0, %s535
    %s537 = scalar_lea.smem [#allocation2], 0
    %538 = sst [smem:[%s537]] %s536
    // Predicated region
    $region14: #{vae_forward.3} parent=1 // pred_check
      _
    $region15: #{vae_forward.3} parent=1 // pred_check_branch
      %540 = sbr.rel (0) target = $region17
    $region16: #{vae_forward.3} parent=1 // pred_region
      %s542 = ssub.s32 16, 16
      %543 = vsyncadd [#allocation3], %s542
      %546 = dma.smem_to_hbm [#allocation2], 16, %s3, [#allocation3]
    $region17: #{vae_forward.3} parent=1 // pred_fallthru
      _
    // Predicated region
    $region18: #{vae_forward.3} parent=1 // pred_check
      _
    $region19: #{vae_forward.3} parent=1 // pred_check_branch
      %548 = sbr.rel (0) target = $region21
    $region20: #{vae_forward.3} parent=1 // pred_region
      _
    $region21: #{vae_forward.3} parent=1 // pred_fallthru
      _
    // Predicated region
    $region22: #{vae_forward.3} parent=1 // pred_check
      _
    $region23: #{vae_forward.3} parent=1 // pred_check_branch
      %550 = sbr.rel (0) target = $region25
    $region24: #{vae_forward.3} parent=1 // pred_region
      _
    $region25: #{vae_forward.3} parent=1 // pred_fallthru
      _
    // Predicated region
    $region26: #{vae_forward.3} parent=1 // pred_check
      _
    $region27: #{vae_forward.3} parent=1 // pred_check_branch
      %552 = sbr.rel (0) target = $region29
    $region28: #{vae_forward.3} parent=1 // pred_region
      %553 = dma.done [#allocation3], 16
    $region29: #{vae_forward.3} parent=1 // pred_fallthru
      _
    // Predicated region
    $region30: #{vae_forward.3} parent=1 // pred_check
      _
    $region31: #{vae_forward.3} parent=1 // pred_check_branch
      %555 = sbr.rel (0) target = $region33
    $region32: #{vae_forward.3} parent=1 // pred_region
      _
    $region33: #{vae_forward.3} parent=1 // pred_fallthru
      _
    // Predicated region
    $region34: #{vae_forward.3} parent=1 // pred_check
      _
    $region35: #{vae_forward.3} parent=1 // pred_check_branch
      %557 = sbr.rel (0) target = $region37
    $region36: #{vae_forward.3} parent=1 // pred_region
      _
    $region37: #{vae_forward.3} parent=1 // pred_fallthru
      _
    %558 = sfence
    %559 = vsyncpa [#allocation3], 1

</llo_original>
